<compile_context>
chip_gen: v5e
topology: v5e:2x2
jax: 0.10.0
libtpu: 0.0.40
codegen_flags: <defaults>
</compile_context>

<pallas_src>
import functools

import jax
import jax.numpy as jnp
from jax import lax
from jax.experimental import pallas as pl
from jax.experimental.pallas import tpu as pltpu


def _round_up(x, m):
    return ((x + m - 1) // m) * m


def _causal_conv1d_kernel(halo_ref, x_ref, w_ref, o_ref, *,
                          kernel_size, dilation, pad, halo, tile_l,
                          compute_dtype):
    # halo_ref: (1, C_in, HALO)   columns [tile_start - HALO, tile_start)
    #                             (clamped to block 0 for the first tile)
    # x_ref   : (1, C_in, TILE_L) columns [tile_start, tile_start + TILE_L)
    # w_ref   : (K, C_out, C_in)  lane-dense per-tap weight tiles (bf16)
    # o_ref   : (1, C_out, TILE_L)
    c_out = o_ref.shape[1]

    x_cur = x_ref[0].astype(compute_dtype)                    # (C_in, TILE_L)
    if pad > 0:
        # Last `pad` columns of the halo block = x[tile_start - pad : tile_start].
        x_halo = halo_ref[0, :, pl.ds(halo - pad, pad)].astype(compute_dtype)
        # First L-tile: the causal left context is zeros, not real data.
        x_halo = jnp.where(pl.program_id(1) == 0,
                           jnp.zeros_like(x_halo), x_halo)
        window = jnp.concatenate([x_halo, x_cur], axis=-1)    # (C_in, pad+TILE_L)
    else:
        window = x_cur

    # K is small & static -> unrolled; each tap is one MXU matmul, f32 accum.
    acc = jnp.zeros((c_out, tile_l), dtype=jnp.float32)
    for i in range(kernel_size):
        w_i = w_ref[i]                                         # (C_out, C_in)
        x_i = lax.slice_in_dim(window, i * dilation, i * dilation + tile_l,
                               axis=1)
        acc = acc + jnp.dot(w_i, x_i, preferred_element_type=jnp.float32)

    o_ref[0] = acc.astype(o_ref.dtype)


def causal_conv1d(x, weight, *, dilation=1, tile_l=512,
                  compute_dtype=jnp.bfloat16):
    """x: (B, C_in, L), weight: (C_out, C_in, K) -> (B, C_out, L)."""
    B, c_in, L = x.shape
    c_out, c_in_w, K = weight.shape
    assert c_in == c_in_w
    pad = (K - 1) * dilation
    out_dtype = x.dtype

    # Aligned halo width (>= pad, multiple of 128) and a lane-dense L tile that
    # is a multiple of the halo so the halo block index is exact.
    halo = _round_up(max(pad, 1), 128)
    tl = _round_up(min(tile_l, _round_up(L, 128)), halo)
    # Prefer a tile that divides L exactly (avoids the x pad copy and the
    # output slice copy), but never drop below 256 / one halo: tiny tiles
    # waste HBM bandwidth on per-step overhead.
    floor_t = max(halo, min(tl, 256))
    t = tl
    while t >= floor_t:
        if L % t == 0:
            tl = t
            break
        t -= halo

    L_pad = _round_up(L, tl)
    n_l = L_pad // tl
    blocks_per_tile = tl // halo

    # Per-tap lane-dense weight tiles (tiny, cast once outside).
    w_c = jnp.transpose(weight, (2, 0, 1)).astype(compute_dtype)

    # x stays in its original dtype (bf16 cast happens on the VMEM tile inside
    # the kernel) and is only copied when L needs right-alignment.
    x_in = x if L_pad == L else jnp.pad(x, ((0, 0), (0, 0), (0, L_pad - L)))

    kernel = functools.partial(
        _causal_conv1d_kernel,
        kernel_size=K, dilation=dilation, pad=pad, halo=halo, tile_l=tl,
        compute_dtype=compute_dtype,
    )

    out = pl.pallas_call(
        kernel,
        out_shape=jax.ShapeDtypeStruct((B, c_out, L_pad), out_dtype),
        grid_spec=pltpu.PrefetchScalarGridSpec(
            num_scalar_prefetch=0,
            grid=(B, n_l),
            in_specs=[
                # Halo: the halo-wide block immediately left of this L tile
                # (clamped to block 0 on the first tile; zeroed in-kernel).
                pl.BlockSpec(
                    (1, c_in, halo),
                    lambda b, j: (b, 0, jnp.maximum(j * blocks_per_tile - 1, 0))),
                # Current L tile.
                pl.BlockSpec((1, c_in, tl), lambda b, j: (b, 0, j)),
                # Full weight, constant block index -> fetched once, stays in VMEM.
                pl.BlockSpec((K, c_out, c_in), lambda b, j: (0, 0, 0)),
            ],
            out_specs=pl.BlockSpec((1, c_out, tl), lambda b, j: (b, 0, j)),
        ),
        compiler_params=pltpu.CompilerParams(
            dimension_semantics=("parallel", "parallel"),
        ),
    )(x_in, x_in, w_c)

    return out if L_pad == L else out[:, :, :L]


def _reference(x, weight, dilation):
    # Plain-JAX reference reproducing the PyTorch module exactly:
    # symmetric padding of (K-1)*dilation, then drop the trailing pad columns.
    K = weight.shape[-1]
    pad = (K - 1) * dilation
    y = lax.conv_general_dilated(
        x, weight,
        window_strides=(1,),
        padding=[(pad, pad)],
        rhs_dilation=(dilation,),
        dimension_numbers=("NCH", "OIH", "NCH"),
        precision=lax.Precision.HIGHEST,
    )
    return y[:, :, :-pad] if pad > 0 else y


if __name__ == "__main__":
    # Small deterministic example consistent with the module's forward:
    # batch=2, in_channels=4, out_channels=8, length=16, kernel_size=3, dilation=2.
    B, C_IN, C_OUT, L, K, DIL = 2, 4, 8, 16, 3, 2

    key = jax.random.PRNGKey(0)
    kx, kw = jax.random.split(key)
    x = jax.random.normal(kx, (B, C_IN, L), dtype=jnp.float32)
    # Deterministic synthetic weight (module uses bias=False by default).
    weight = jax.random.normal(kw, (C_OUT, C_IN, K), dtype=jnp.float32) * 0.1

    out = causal_conv1d(x, weight, dilation=DIL)
    out = jax.block_until_ready(out)

    # Reference computed on the bf16-rounded operands (kernel does bf16 x bf16
    # products with f32 accumulation on the MXU).
    xr = x.astype(jnp.bfloat16).astype(jnp.float32)
    wr = weight.astype(jnp.bfloat16).astype(jnp.float32)
    ref = _reference(xr, wr, DIL)

    assert out.shape == (B, C_OUT, L)
    assert jnp.allclose(out, ref, atol=2e-3, rtol=2e-3), float(
        jnp.max(jnp.abs(out - ref)))

    print("KERNEL_OK")
</pallas_src>

<mosaic_0001>
module attributes {stable_mosaic.version = 11 : i64} {
  func.func @_causal_conv1d_kernel(%arg0: i32, %arg1: i32, %arg2: memref<1x4x128xf32, #tpu.memory_space<vmem>>, %arg3: memref<1x4x128xf32, #tpu.memory_space<vmem>>, %arg4: memref<3x8x4xbf16, #tpu.memory_space<vmem>>, %arg5: memref<1x8x128xf32, #tpu.memory_space<vmem>>) attributes {dimension_semantics = [#tpu.dimension_semantics<parallel>, #tpu.dimension_semantics<parallel>], iteration_bounds = array<i64: 2, 1>, scalar_prefetch = 0 : i64, scratch_operands = 0 : i64, tpu.core_type = #tpu.core_type<tc>, window_params = [{transform_indices = @transform_0, window_bounds = array<i64: 1, 4, 128>}, {transform_indices = @transform_1, window_bounds = array<i64: 1, 4, 128>}, {pipeline_mode = #tpu.pipeline_mode<synchronous>, transform_indices = @transform_2, window_bounds = array<i64: 3, 8, 4>}, {transform_indices = @transform_3, window_bounds = array<i64: 1, 8, 128>}]} {
    %c0 = arith.constant 0 : index
    %c0_0 = arith.constant 0 : index
    %c0_1 = arith.constant 0 : index
    %0 = vector.load %arg3[%c0, %c0_0, %c0_1] : memref<1x4x128xf32, #tpu.memory_space<vmem>>, vector<1x4x128xf32>
    %1 = vector.shape_cast %0 : vector<1x4x128xf32> to vector<4x128xf32>
    %2 = arith.truncf %1 : vector<4x128xf32> to vector<4x128xbf16>
    %c0_2 = arith.constant 0 : index
    %c0_3 = arith.constant 0 : index
    %c124 = arith.constant 124 : index
    %3 = vector.load %arg2[%c0_2, %c0_3, %c124] : memref<1x4x128xf32, #tpu.memory_space<vmem>>, vector<1x4x4xf32>
    %4 = vector.shape_cast %3 : vector<1x4x4xf32> to vector<4x4xf32>
    %5 = arith.truncf %4 : vector<4x4xf32> to vector<4x4xbf16>
    %c0_i32 = arith.constant 0 : i32
    %6 = arith.cmpi eq, %arg1, %c0_i32 : i32
    %cst = arith.constant 0.000000e+00 : bf16
    %7 = vector.broadcast %cst : bf16 to vector<4x4xbf16>
    %8 = arith.select %6, %7, %5 : vector<4x4xbf16>
    %9 = tpu.concatenate %8, %2 in 1 : vector<4x4xbf16>, vector<4x128xbf16> -> vector<4x132xbf16>
    %cst_4 = arith.constant 0.000000e+00 : f32
    %10 = vector.broadcast %cst_4 : f32 to vector<8x128xf32>
    %c0_5 = arith.constant 0 : index
    %c0_6 = arith.constant 0 : index
    %c0_7 = arith.constant 0 : index
    %11 = vector.load %arg4[%c0_5, %c0_6, %c0_7] : memref<3x8x4xbf16, #tpu.memory_space<vmem>>, vector<1x8x4xbf16>
    %12 = vector.shape_cast %11 : vector<1x8x4xbf16> to vector<8x4xbf16>
    %13 = vector.extract_strided_slice %9 {offsets = [0, 0], sizes = [4, 128], strides = [1, 1]} : vector<4x132xbf16> to vector<4x128xbf16>
    %cst_8 = arith.constant dense<0.000000e+00> : vector<8x128xf32>
    %14 = tpu.matmul %12, %13, %cst_8 {dimension_numbers = #tpu.dot_dimension_numbers<[1], [0], [0], [1], [0, 0, 1, 1], [], []>} : vector<8x4xbf16>, vector<4x128xbf16>, vector<8x128xf32> -> vector<8x128xf32>
    %15 = arith.addf %10, %14 : vector<8x128xf32>
    %c1 = arith.constant 1 : index
    %c0_9 = arith.constant 0 : index
    %c0_10 = arith.constant 0 : index
    %16 = vector.load %arg4[%c1, %c0_9, %c0_10] : memref<3x8x4xbf16, #tpu.memory_space<vmem>>, vector<1x8x4xbf16>
    %17 = vector.shape_cast %16 : vector<1x8x4xbf16> to vector<8x4xbf16>
    %18 = vector.extract_strided_slice %9 {offsets = [0, 2], sizes = [4, 128], strides = [1, 1]} : vector<4x132xbf16> to vector<4x128xbf16>
    %cst_11 = arith.constant dense<0.000000e+00> : vector<8x128xf32>
    %19 = tpu.matmul %17, %18, %cst_11 {dimension_numbers = #tpu.dot_dimension_numbers<[1], [0], [0], [1], [0, 0, 1, 1], [], []>} : vector<8x4xbf16>, vector<4x128xbf16>, vector<8x128xf32> -> vector<8x128xf32>
    %20 = arith.addf %15, %19 : vector<8x128xf32>
    %c2 = arith.constant 2 : index
    %c0_12 = arith.constant 0 : index
    %c0_13 = arith.constant 0 : index
    %21 = vector.load %arg4[%c2, %c0_12, %c0_13] : memref<3x8x4xbf16, #tpu.memory_space<vmem>>, vector<1x8x4xbf16>
    %22 = vector.shape_cast %21 : vector<1x8x4xbf16> to vector<8x4xbf16>
    %23 = vector.extract_strided_slice %9 {offsets = [0, 4], sizes = [4, 128], strides = [1, 1]} : vector<4x132xbf16> to vector<4x128xbf16>
    %cst_14 = arith.constant dense<0.000000e+00> : vector<8x128xf32>
    %24 = tpu.matmul %22, %23, %cst_14 {dimension_numbers = #tpu.dot_dimension_numbers<[1], [0], [0], [1], [0, 0, 1, 1], [], []>} : vector<8x4xbf16>, vector<4x128xbf16>, vector<8x128xf32> -> vector<8x128xf32>
    %25 = arith.addf %20, %24 : vector<8x128xf32>
    %c0_15 = arith.constant 0 : index
    %c0_16 = arith.constant 0 : index
    %c0_17 = arith.constant 0 : index
    %26 = vector.load %arg5[%c0_15, %c0_16, %c0_17] : memref<1x8x128xf32, #tpu.memory_space<vmem>>, vector<1x8x128xf32>
    %27 = vector.shape_cast %26 : vector<1x8x128xf32> to vector<8x128xf32>
    %28 = vector.shape_cast %25 : vector<8x128xf32> to vector<1x8x128xf32>
    tpu.vector_store %arg5[%c0_15, %c0_16, %c0_17], %28 {strides = array<i32>} : memref<1x8x128xf32, #tpu.memory_space<vmem>>, vector<1x8x128xf32>,
    return
  }
  func.func @transform_0(%arg0: i32, %arg1: i32) -> (i32, i32, i32) {
    %c1_i32 = arith.constant 1 : i32
    %0 = arith.muli %arg1, %c1_i32 : i32
    %c1_i32_0 = arith.constant 1 : i32
    %1 = arith.subi %0, %c1_i32_0 : i32
    %c0_i32 = arith.constant 0 : i32
    %2 = arith.maxsi %1, %c0_i32 : i32
    %c0_i32_1 = arith.constant 0 : i32
    %c0_i32_2 = arith.constant 0 : i32
    return %arg0, %c0_i32_1, %2 : i32, i32, i32
  }
  func.func @transform_1(%arg0: i32, %arg1: i32) -> (i32, i32, i32) {
    %c0_i32 = arith.constant 0 : i32
    %c0_i32_0 = arith.constant 0 : i32
    return %arg0, %c0_i32, %arg1 : i32, i32, i32
  }
  func.func @transform_2(%arg0: i32, %arg1: i32) -> (i32, i32, i32) {
    %c0_i32 = arith.constant 0 : i32
    %c0_i32_0 = arith.constant 0 : i32
    %c0_i32_1 = arith.constant 0 : i32
    %c0_i32_2 = arith.constant 0 : i32
    return %c0_i32, %c0_i32_0, %c0_i32_1 : i32, i32, i32
  }
  func.func @transform_3(%arg0: i32, %arg1: i32) -> (i32, i32, i32) {
    %c0_i32 = arith.constant 0 : i32
    %c0_i32_0 = arith.constant 0 : i32
    return %arg0, %c0_i32, %arg1 : i32, i32, i32
  }
}

</mosaic_0001>

<llo_original>
// kernel: tpu_custom_call.1
$region0: #{tpu_custom_call.1}
  #allocation0 [shape = 'u32[]', space=smem, size = 0x4, offset = 0x4, fixed_abs, tag = 'smem constant byte address 0x4 - core index']
  #allocation1 [shape = 'u32[72,128]{1,0:T(1,128)}', space=vmem, size = 0x9000, scoped, tag = 'internal scratch']
  %s0 = inlined_call_operand.vmem [shape: f32[2,4,128], index: 0, kind: input, shape index: {}]
  %s1 = inlined_call_operand.vmem [shape: f32[2,4,128], index: 1, kind: input, shape index: {}]
  %s2 = inlined_call_operand.vmem [shape: bf16[3,8,4], index: 2, kind: input, shape index: {}]
  %s3 = inlined_call_operand.hbm [shape: f32[2,8,128], index: 3, kind: output, shape index: {}]
  %s4 = sld [smem:[#allocation0]]
  $region45: #{tpu_custom_call.1} parent=0
    _
  %s6 = ssub.s32 1, %s4
  %s7 = scalar_select 0, %s6, %s4
  $region1: #{tpu_custom_call.1} parent=0
    #allocation2 [shape = 'u8[8192]{0}', space=vmem, size = 0x2000, scoped, tag = 'output window, operand 0']
    #allocation3 [shape = 's32[2]{0}', space=sflag, size = 0x8, scoped, tag = 'scoped memory for tpu_custom_call.1']
    %8 = vsyncpa [#allocation3], 0
    %s9 = scalar_lea.sflag [#allocation3], 1
    %10 = vsyncpa %s9, 0
    loop: start=0, step=1, limit=4
    $region2: #{tpu_custom_call.1} parent=1 // loop_pre_header
      _
    $region3: #{tpu_custom_call.1} parent=1 // loop_header
      %s12 = sphi 0, %s16
      %p13 = scmp.ge.s32.totalorder %s12, 4
      %s19 = sphi 0, %s31
      %s20 = sphi 0, %s27
      %s21 = sphi 0, %s19
      %s22 = sphi 0, %s20
      %s23 = sphi 0, %s21
      %s24 = sphi 0, %s22
      %s42 = sphi 0, %s44
      %s45 = sphi 0, %s42
      %s46 = sphi 0, %s45
      %s62 = sphi 0, %s46
      %s70 = sphi 0, %s72
      %s73 = sphi 0, %s70
      %s74 = sphi 0, %s73
      %s90 = sphi 0, %s74
      %s94 = sphi 0, %s94
      %s96 = sphi 0, %s94
      %s97 = sphi 0, %s96
      %s111 = sphi 0, %s97
      %s119 = sphi 0, %s121
      %s122 = sphi 0, %s119
      %s123 = sphi 0, %s122
      %s139 = sphi 0, %s123
    $region4: #{tpu_custom_call.1} parent=1 // loop_header_branch
      %15 = sbr.rel (%p13) target = $region8
    $region5: #{tpu_custom_call.1} parent=1 // loop_body
      %s17 = ssub.s32 %s12, 1
      %s18 = ssub.s32 %s12, 2
      %s25 = sadd.s32 1, %s20
      %p26 = scmp.ge.s32.totalorder %s25, 1
      %s27 = scalar_select %p26, 0, %s25
      %s28 = sadd.s32 1, %s19
      %s29 = scalar_select %p26, %s28, %s19
      %p30 = scmp.ge.s32.totalorder %s29, 2
      %s31 = scalar_select %p30, 0, %s29
      %s32 = ssub.s32 %s20, 1
      %p33 = scmp.gt.s32.totalorder %s32, 0
      %s34 = scalar_select %p33, %s32, 0
      %s35 = ssub.s32 %s27, 1
      %p36 = scmp.gt.s32.totalorder %s35, 0
      %s37 = scalar_select %p36, %s35, 0
      %s38 = ssub.s32 %s19, %s31
      %s39 = ssub.s32 %s34, %s37
      %s40 = sor.u32 %s38, %s39
      %p41 = scmp.eq.s32.totalorder %s40, 0
      %s43 = sadd.s32 %s42, 1
      %s44 = scalar_select %p41, %s42, %s43
      %p47 = pneg %p41
      %p48 = scmp.eq.s32.totalorder %s12, 1
      %p49 = por %p47, %p48
      %p50 = scmp.ne.s32.totalorder %s42, %s45
      %p51 = scmp.eq.s32.totalorder %s12, 0
      %p52 = por %p50, %p51
      %p53 = scmp.ne.s32.totalorder %s42, %s45
      %p54 = scmp.eq.s32.totalorder %s17, 1
      %p55 = por %p53, %p54
      %p56 = scmp.ne.s32.totalorder %s45, %s46
      %p57 = scmp.eq.s32.totalorder %s17, 0
      %p58 = por %p56, %p57
      %p59 = scmp.ne.s32.totalorder %s45, %s46
      %p60 = scmp.eq.s32.totalorder %s18, 1
      %p61 = por %p59, %p60
      %p63 = scmp.ne.s32.totalorder %s46, %s62
      %p64 = scmp.eq.s32.totalorder %s18, 0
      %p65 = por %p63, %p64
      %s66 = ssub.s32 %s19, %s31
      %s67 = ssub.s32 %s20, %s27
      %s68 = sor.u32 %s66, %s67
      %p69 = scmp.eq.s32.totalorder %s68, 0
      %s71 = sadd.s32 %s70, 1
      %s72 = scalar_select %p69, %s70, %s71
      %p75 = pneg %p69
      %p76 = scmp.eq.s32.totalorder %s12, 1
      %p77 = por %p75, %p76
      %p78 = scmp.ne.s32.totalorder %s70, %s73
      %p79 = scmp.eq.s32.totalorder %s12, 0
      %p80 = por %p78, %p79
      %p81 = scmp.ne.s32.totalorder %s70, %s73
      %p82 = scmp.eq.s32.totalorder %s17, 1
      %p83 = por %p81, %p82
      %p84 = scmp.ne.s32.totalorder %s73, %s74
      %p85 = scmp.eq.s32.totalorder %s17, 0
      %p86 = por %p84, %p85
      %p87 = scmp.ne.s32.totalorder %s73, %s74
      %p88 = scmp.eq.s32.totalorder %s18, 1
      %p89 = por %p87, %p88
      %p91 = scmp.ne.s32.totalorder %s74, %s90
      %p92 = scmp.eq.s32.totalorder %s18, 0
      %p93 = por %p91, %p92
      %s95 = sadd.s32 %s94, 1
      %p98 = scmp.eq.s32.totalorder %s12, 1
      %p99 = scmp.ne.s32.totalorder %s94, %s96
      %p100 = scmp.eq.s32.totalorder %s12, 0
      %p101 = por %p99, %p100
      %p102 = scmp.ne.s32.totalorder %s94, %s96
      %p103 = scmp.eq.s32.totalorder %s17, 1
      %p104 = por %p102, %p103
      %p105 = scmp.ne.s32.totalorder %s96, %s97
      %p106 = scmp.eq.s32.totalorder %s17, 0
      %p107 = por %p105, %p106
      %p108 = scmp.ne.s32.totalorder %s96, %s97
      %p109 = scmp.eq.s32.totalorder %s18, 1
      %p110 = por %p108, %p109
      %p112 = scmp.ne.s32.totalorder %s97, %s111
      %p113 = scmp.eq.s32.totalorder %s18, 0
      %p114 = por %p112, %p113
      %s115 = ssub.s32 %s19, %s31
      %s116 = ssub.s32 %s20, %s27
      %s117 = sor.u32 %s115, %s116
      %p118 = scmp.eq.s32.totalorder %s117, 0
      %s120 = sadd.s32 %s119, 1
      %s121 = scalar_select %p118, %s119, %s120
      %p124 = pneg %p118
      %p125 = scmp.eq.s32.totalorder %s12, 1
      %p126 = por %p124, %p125
      %p127 = scmp.ne.s32.totalorder %s119, %s122
      %p128 = scmp.eq.s32.totalorder %s12, 0
      %p129 = por %p127, %p128
      %p130 = scmp.ne.s32.totalorder %s119, %s122
      %p131 = scmp.eq.s32.totalorder %s17, 1
      %p132 = por %p130, %p131
      %p133 = scmp.ne.s32.totalorder %s122, %s123
      %p134 = scmp.eq.s32.totalorder %s17, 0
      %p135 = por %p133, %p134
      %p136 = scmp.ne.s32.totalorder %s122, %s123
      %p137 = scmp.eq.s32.totalorder %s18, 1
      %p138 = por %p136, %p137
      %p140 = scmp.ne.s32.totalorder %s123, %s139
      %p141 = scmp.eq.s32.totalorder %s18, 0
      %p142 = por %p140, %p141
      %p143 = scmp.le.s32.totalorder 1, %s12
      %p144 = scmp.lt.s32.totalorder %s12, 3
      %p145 = pnand %p143, %p144
      %p146 = pneg %p145
      // Predicated region
      $region9: #{tpu_custom_call.1} parent=5 // pred_check
        _
      $region10: #{tpu_custom_call.1} parent=5 // pred_check_branch
        %148 = sbr.rel (%p145) target = $region12
      $region11: #{tpu_custom_call.1} parent=5 // pred_region
        %s149 = ssub.s32 %s12, 1
        // Predicated region
        $region13: #{tpu_custom_call.1} parent=11 // pred_check
          %p150 = pneg %p107
        $region14: #{tpu_custom_call.1} parent=11 // pred_check_branch
          %152 = sbr.rel (%p150) target = $region16
        $region15: #{tpu_custom_call.1} parent=11 // pred_region
          _
        $region16: #{tpu_custom_call.1} parent=11 // pred_fallthru
          _
      $region12: #{tpu_custom_call.1} parent=5 // pred_fallthru
        _
      %p153 = scmp.lt.s32.totalorder %s12, 2
      // Predicated region
      $region17: #{tpu_custom_call.1} parent=5 // pred_check
        %p154 = pneg %p153
      $region18: #{tpu_custom_call.1} parent=5 // pred_check_branch
        %156 = sbr.rel (%p154) target = $region20
      $region19: #{tpu_custom_call.1} parent=5 // pred_region
        // Predicated region
        $region21: #{tpu_custom_call.1} parent=19 // pred_check
          %p157 = pneg %p52
        $region22: #{tpu_custom_call.1} parent=19 // pred_check_branch
          %159 = sbr.rel (%p157) target = $region24
        $region23: #{tpu_custom_call.1} parent=19 // pred_region
          %s160 = ssub.s32 %s20, 1
          %p161 = scmp.gt.s32.totalorder %s160, 0
          %s162 = scalar_select %p161, %s160, 0
          %p163 = scmp.lt.s32.totalorder %s19, 1
          %s164 = scalar_select %p163, %s19, 1
          %p165 = scmp.lt.s32.totalorder %s162, 0
          %s166 = scalar_select %p165, %s162, 0
          %s167 = sadd.s32 %s166, %s164
          %s168 = smul.addr %s167, 4
          %s169 = scalar_lea.vmem %s0, %s168
          %s170 = ssub.s32 %s20, 1
          %p171 = scmp.gt.s32.totalorder %s170, 0
          %s172 = scalar_select %p171, %s170, 0
        $region24: #{tpu_custom_call.1} parent=19 // pred_fallthru
          _
        // Predicated region
        $region25: #{tpu_custom_call.1} parent=19 // pred_check
          %p173 = pneg %p80
        $region26: #{tpu_custom_call.1} parent=19 // pred_check_branch
          %175 = sbr.rel (%p173) target = $region28
        $region27: #{tpu_custom_call.1} parent=19 // pred_region
          %p176 = scmp.lt.s32.totalorder %s19, 1
          %s177 = scalar_select %p176, %s19, 1
          %p178 = scmp.lt.s32.totalorder %s20, 0
          %s179 = scalar_select %p178, %s20, 0
          %s180 = sadd.s32 %s179, %s177
          %s181 = smul.addr %s180, 4
          %s182 = scalar_lea.vmem %s1, %s181
        $region28: #{tpu_custom_call.1} parent=19 // pred_fallthru
          _
      $region20: #{tpu_custom_call.1} parent=5 // pred_fallthru
        _
      %p183 = scmp.le.s32.totalorder 1, %s12
      %p184 = scmp.lt.s32.totalorder %s12, 3
      %p185 = pnand %p183, %p184
      %p186 = pneg %p185
      // Predicated region
      $region29: #{tpu_custom_call.1} parent=5 // pred_check
        _
      $region30: #{tpu_custom_call.1} parent=5 // pred_check_branch
        %188 = sbr.rel (%p185) target = $region32
      $region31: #{tpu_custom_call.1} parent=5 // pred_region
        %s189 = ssub.s32 %s12, 1
        %s190 = ssub.s32 %s22, 1
        %p191 = scmp.gt.s32.totalorder %s190, 0
        %s192 = scalar_select %p191, %s190, 0
        %p193 = scmp.lt.s32.totalorder %s21, 1
        %s194 = scalar_select %p193, %s21, 1
        %p195 = scmp.lt.s32.totalorder %s192, 0
        %s196 = scalar_select %p195, %s192, 0
        %s197 = sadd.s32 %s196, %s194
        %s198 = smul.addr %s197, 4
        %s199 = scalar_lea.vmem %s0, %s198
        %p200 = pneg %p58
        %p201 = pneg %p55
        %p202 = scmp.lt.s32.totalorder %s21, 1
        %s203 = scalar_select %p202, %s21, 1
        %p204 = scmp.lt.s32.totalorder %s22, 0
        %s205 = scalar_select %p204, %s22, 0
        %s206 = sadd.s32 %s205, %s203
        %s207 = smul.addr %s206, 4
        %s208 = scalar_lea.vmem %s1, %s207
        %p209 = pneg %p86
        %p210 = pneg %p83
        %p211 = pneg %p107
        %p212 = pneg %p104
        %p213 = pneg %p135
        %p214 = pneg %p132
        %s215 = sand.u32 %s122, 1
        %s216 = scalar_lea.sflag [#allocation3], %s215
        %s217 = sand.u32 %s122, 1
        %s218 = smul.addr %s217, 8
        %s219 = scalar_lea.vmem [#allocation2], %s218
        %s220 = ssub.s32 %s22, 1
        %p221 = scmp.gt.s32.totalorder %s220, 0
        %s222 = scalar_select %p221, %s220, 0
        %p223 = scmp.lt.s32.totalorder %s21, 1
        %s224 = scalar_select %p223, %s21, 1
        %p225 = scmp.lt.s32.totalorder %s222, 0
        %s226 = scalar_select %p225, %s222, 0
        %s227 = sadd.s32 %s226, %s224
        %s228 = smul.addr %s227, 4
        %s229 = scalar_lea.vmem %s0, %s228
        %s230 = ssub.s32 %s22, 1
        %p231 = scmp.gt.s32.totalorder %s230, 0
        %s232 = scalar_select %p231, %s230, 0
        %p233 = scmp.lt.s32.totalorder %s21, 1
        %s234 = scalar_select %p233, %s21, 1
        %p235 = scmp.lt.s32.totalorder %s22, 0
        %s236 = scalar_select %p235, %s22, 0
        %s237 = sadd.s32 %s236, %s234
        %s238 = smul.addr %s237, 4
        %s239 = scalar_lea.vmem %s1, %s238
        %v241 = vld [vmem:[%s239] sm:$0xf]
        %v242 = vpack.c.bf16 %v241, %v241
        %v243 = vld [vmem:[%s229] sm:$0xf]
        %v244 = vpack.c.bf16 %v243, %v243
        %p245 = scmp.eq.s32.totalorder %s22, 0
        %s246 = scalar_select %p245, 1, 0
        %v247 = vstv %s246
        %vm248 = vcmp.eq.s32.totalorder %v247, 1
        %v249 = vsel %vm248, 0, %v244
        %v251 = vunpack.c.l.b16 %v249
        %v252 = vpack.c.b16 %v251, %v251
        %253 = vrot.lane.b32.xlu0 %v252, 4
        %v254 = vpop.permute.xlu0 %253
        %v256 = vunpack.c.l.b16 %v242
        %v257 = vpack.c.b16 %v256, %v256
        %258 = vrot.lane.b32.xlu0 %v257, 4
        %v259 = vpop.permute.xlu0 %258
        %vm260 = vcmask 31744
        %v263 = vsel %vm260, %v254, %v259
        %v264 = vld [vmem:[%s2] sm:$0xf]
        %s265 = scalar_lea.vmem %s2, 4
        %v266 = vld [vmem:[%s265] sm:$0xf]
        %268 = vrot.lane.b32.xlu0 %v263, 126
        %v269 = vpop.permute.xlu0 %268
        %270 = vrot.lane.b32.xlu0 %v259, 126
        %v271 = vpop.permute.xlu0 %270
        %vm272 = vcmask 1031168
        %v273 = vsel %vm272, %v269, %v271
        %v275 = vsel %vm260, %v266, 0
        %vm277 = vcmask 1041408
        %v279 = vsel %vm277, %v273, 0
        %281 = vmatpush.bf16.msra.mxu0 0
        %282 = vmatpush.bf16.msra.mxu0 0
        %283 = vmatpush.bf16.msra.mxu0 0
        %284 = vmatpush.bf16.msra.mxu0 0
        %285 = vmatpush.bf16.msra.mxu0 0
        %286 = vmatpush.bf16.msra.mxu0 0
        %287 = vmatpush.bf16.msra.mxu0 0
        %288 = vmatpush.bf16.msra.mxu0 %v279
        %289 = vmatmul.bf16.gmra.mxu0 %v275
        %v290 = vpop.f32.mrf.mxu0
        %v291 = vadd.f32 0.0, %v290
        %v292 = vpop.f32.mrf.mxu0
        %293 = vdwg.mxu0
        %v295 = vsel %vm260, %v264, 0
        %v297 = vsel %vm277, %v263, 0
        %299 = vmatpush.bf16.msra.mxu0 0
        %300 = vmatpush.bf16.msra.mxu0 0
        %301 = vmatpush.bf16.msra.mxu0 0
        %302 = vmatpush.bf16.msra.mxu0 0
        %303 = vmatpush.bf16.msra.mxu0 0
        %304 = vmatpush.bf16.msra.mxu0 0
        %305 = vmatpush.bf16.msra.mxu0 0
        %306 = vmatpush.bf16.msra.mxu0 %v297
        %307 = vmatmul.bf16.gmra.mxu0 %v295
        %v308 = vpop.f32.mrf.mxu0
        %v309 = vadd.f32 %v291, %v308
        %v310 = vpop.f32.mrf.mxu0
        %311 = vdwg.mxu0
        %s312 = scalar_lea.vmem %s2, 8
        %v313 = vld [vmem:[%s312] sm:$0xf]
        %314 = vrot.lane.b32.xlu0 %v263, 124
        %v315 = vpop.permute.xlu0 %314
        %316 = vrot.lane.b32.xlu0 %v259, 124
        %v317 = vpop.permute.xlu0 %316
        %vm318 = vcmask 1014784
        %v319 = vsel %vm318, %v315, %v317
        %v321 = vsel %vm260, %v313, 0
        %v324 = vsel %vm277, %v319, 0
        %326 = vmatpush.bf16.msra.mxu0 0
        %327 = vmatpush.bf16.msra.mxu0 0
        %328 = vmatpush.bf16.msra.mxu0 0
        %329 = vmatpush.bf16.msra.mxu0 0
        %330 = vmatpush.bf16.msra.mxu0 0
        %331 = vmatpush.bf16.msra.mxu0 0
        %332 = vmatpush.bf16.msra.mxu0 0
        %333 = vmatpush.bf16.msra.mxu0 %v324
        %334 = vmatmul.bf16.gmra.mxu0 %v321
        %v335 = vpop.f32.mrf.mxu0
        %v336 = vadd.f32 0.0, %v335
        %v337 = vpop.f32.mrf.mxu0
        %338 = vdwg.mxu0
        %v339 = vadd.f32 %v309, %v336
        %340 = vst [vmem:[%s219] sm:$0xff] %v339
        %s341 = sand.u32 %s122, 1
        %s342 = scalar_lea.sflag [#allocation3], %s341
        %s343 = sand.u32 %s122, 1
        %s344 = smul.addr %s343, 8
        %s345 = scalar_lea.vmem [#allocation2], %s344
        // Predicated region
        $region33: #{tpu_custom_call.1} parent=31 // pred_check
          %p346 = pneg %p132
        $region34: #{tpu_custom_call.1} parent=31 // pred_check_branch
          %348 = sbr.rel (%p346) target = $region36
        $region35: #{tpu_custom_call.1} parent=31 // pred_region
          %350 = vsyncadd %s342, 0
          %s351 = sadd.s32 %s22, %s21
          %s352 = smul.addr %s351, 8
          %s353 = scalar_lea.hbm %s3, %s352
          %s355 = sshll.u32 %s345, 4
          %s356 = int_to_ptr.vmem [resolvable:$true] %s355
          %s357 = sshll.u32 %s353, 4
          %s358 = int_to_ptr.hbm [resolvable:$true] %s357
          %360 = dma.vmem_to_hbm [thread:$0]  %s356, 128, %s358, %s342
        $region36: #{tpu_custom_call.1} parent=31 // pred_fallthru
          _
      $region32: #{tpu_custom_call.1} parent=5 // pred_fallthru
        _
      %p361 = scmp.le.s32.totalorder 2, %s12
      // Predicated region
      $region37: #{tpu_custom_call.1} parent=5 // pred_check
        %p362 = pneg %p361
      $region38: #{tpu_custom_call.1} parent=5 // pred_check_branch
        %364 = sbr.rel (%p362) target = $region40
      $region39: #{tpu_custom_call.1} parent=5 // pred_region
        %s365 = ssub.s32 %s12, 2
        // Predicated region
        $region41: #{tpu_custom_call.1} parent=39 // pred_check
          %p366 = pneg %p138
        $region42: #{tpu_custom_call.1} parent=39 // pred_check_branch
          %368 = sbr.rel (%p366) target = $region44
        $region43: #{tpu_custom_call.1} parent=39 // pred_region
          %s369 = sand.u32 %s123, 1
          %s370 = scalar_lea.sflag [#allocation3], %s369
          %s371 = sand.u32 %s123, 1
          %s372 = smul.addr %s371, 8
          %s373 = scalar_lea.vmem [#allocation2], %s372
          %375 = dma.done %s370, 128
        $region44: #{tpu_custom_call.1} parent=39 // pred_fallthru
          _
      $region40: #{tpu_custom_call.1} parent=5 // pred_fallthru
        _
    $region6: #{tpu_custom_call.1} parent=1 // loop_footer
      %s16 = sadd.s32 1, %s12
    $region7: #{tpu_custom_call.1} parent=1 // loop_footer_branch
      %11 = sbr.rel target = $region3
    $region8: #{tpu_custom_call.1} parent=1 // loop_exit
      _
    %376 = vsyncpa [#allocation3], 1
    %s377 = scalar_lea.sflag [#allocation3], 1
    %378 = vsyncpa %s377, 1

</llo_original>
